<compile_context>
chip_gen: v7x
topology: tpu7x:2x2x1
jax: 0.10.0
libtpu: 0.0.40
codegen_flags: <defaults>
</compile_context>

<pallas_src>
import jax
import jax.numpy as jnp
from jax.experimental import pallas as pl
from jax.experimental.pallas import tpu as pltpu


def _round_up(n: int, m: int) -> int:
    return ((n + m - 1) // m) * m


def _make_kernel(sample: bool, Z: int, Y: int, out_w: int):
    """Kernel over one (TN, ...) row tile. Refs:
         sample=True : x, mask, eps_y, eps_z, w1, b1, w2, out
         sample=False: x, mask,               w1, b1, w2, out
    """

    def kernel(*refs):
        if sample:
            x_ref, m_ref, eps_y_ref, eps_z_ref, w1_ref, b1_ref, w2_ref, out_ref = refs
        else:
            x_ref, m_ref, w1_ref, b1_ref, w2_ref, out_ref = refs

        x = x_ref[...]                                # (TN, D)  f32
        m = m_ref[...]                                # (TN, 1)  f32 (0/1 mask)

        # --- stage 1: one fused MXU matmul for all four Linears' x-columns ---
        h1 = jnp.dot(x, w1_ref[...],
                     preferred_element_type=jnp.float32) + b1_ref[...]
        mean2_qs = h1[:, 0:Y]                         # q_mean2_mlp(x)
        logvar2_qs = h1[:, Y:2 * Y]                   # q_logvar2_mlp(x)
        mean_x = h1[:, 2 * Y:2 * Y + Z]               # q_mean_mlp x-part (+ bias)
        logvar_x = h1[:, 2 * Y + Z:2 * Y + 2 * Z]     # q_logvar_mlp x-part (+ bias)

        # --- y: reparameterized Gaussian (or mean), masked ---
        if sample:
            y = (mean2_qs + jnp.exp(0.5 * logvar2_qs) * eps_y_ref[...]) * m
        else:
            y = mean2_qs * m

        # --- stage 2: y-columns of the cat([x, y]) Linears (no concat needed) ---
        h2 = jnp.dot(y, w2_ref[...], preferred_element_type=jnp.float32)
        mean_qs = mean_x + h2[:, 0:Z]
        logvar_qs = logvar_x + h2[:, Z:2 * Z]

        # --- z: reparameterized Gaussian (or mean), masked ---
        if sample:
            z = (mean_qs + jnp.exp(0.5 * logvar_qs) * eps_z_ref[...]) * m
        else:
            z = mean_qs * m

        # --- single lane-dense packed store ---
        pieces = [z, y, mean_qs, logvar_qs, mean2_qs, logvar2_qs]
        pad_w = out_w - (3 * Z + 3 * Y)
        if pad_w > 0:
            pieces.append(jnp.zeros((z.shape[0], pad_w), jnp.float32))
        out_ref[...] = jnp.concatenate(pieces, axis=-1)

    return kernel


def gaussian_hier_layer_forward(inputs, mask, params, *, sample=True,
                                key=None, eps_y=None, eps_z=None,
                                tile_rows=1024):
    """inputs: (B, T, D) f32; mask: (B, T) f32 (0/1).
    Returns (z, y, mean_qs, logvar_qs, mean2_qs, logvar2_qs), shapes matching PyTorch.
    """
    B, T, D = inputs.shape
    Y = params["w_mean2"].shape[1]
    Z = params["w_mean"].shape[1]
    N = B * T

    # --- fuse weights once, wrapper-side (tiny, stays resident in VMEM) ---
    w1 = jnp.concatenate(
        [params["w_mean2"], params["w_logvar2"],
         params["w_mean"][:D], params["w_logvar"][:D]], axis=1
    ).astype(jnp.float32)                                   # (D, 2Y + 2Z)
    b1 = jnp.concatenate(
        [params["b_mean2"], params["b_logvar2"],
         params["b_mean"], params["b_logvar"]]
    ).reshape(1, -1).astype(jnp.float32)                    # (1, 2Y + 2Z)
    w2 = jnp.concatenate(
        [params["w_mean"][D:], params["w_logvar"][D:]], axis=1
    ).astype(jnp.float32)                                   # (Y, 2Z)
    W1C = 2 * Y + 2 * Z
    W2C = 2 * Z

    OUT_W = _round_up(3 * Z + 3 * Y, 128)                   # lane-dense packed slab

    # Row tile: multiple of 8 sublanes, modest so it fits comfortably in VMEM on
    # all of v5e/v6e/v7x (per-row footprint here is well under 1 KiB, x2 buffers).
    TN = min(_round_up(tile_rows, 8), _round_up(N, 8))
    N_pad = _round_up(N, TN)
    grid = (N_pad // TN,)

    x = inputs.reshape(N, D).astype(jnp.float32)
    m = mask.reshape(N, 1).astype(jnp.float32)
    if N_pad != N:
        pad = N_pad - N
        x = jnp.pad(x, ((0, pad), (0, 0)))
        m = jnp.pad(m, ((0, pad), (0, 0)))

    def row_spec(w):
        return pl.BlockSpec((TN, w), lambda i: (i, 0))

    def fixed_spec(r, w):
        return pl.BlockSpec((r, w), lambda i: (0, 0))

    in_arrays = [x, m]
    in_specs = [row_spec(D), row_spec(1)]

    if sample:
        if eps_y is None or eps_z is None:
            if key is None:
                key = jax.random.PRNGKey(0)
            ky, kz = jax.random.split(key)
            if eps_y is None:
                eps_y = jax.random.normal(ky, (N, Y), jnp.float32)
            if eps_z is None:
                eps_z = jax.random.normal(kz, (N, Z), jnp.float32)
        eps_y = jnp.asarray(eps_y, jnp.float32).reshape(N, Y)
        eps_z = jnp.asarray(eps_z, jnp.float32).reshape(N, Z)
        if N_pad != N:
            eps_y = jnp.pad(eps_y, ((0, N_pad - N), (0, 0)))
            eps_z = jnp.pad(eps_z, ((0, N_pad - N), (0, 0)))
        in_arrays += [eps_y, eps_z]
        in_specs += [row_spec(Y), row_spec(Z)]
    # else: no noise operands at all on the eval path (no zero-noise DMA traffic).

    in_arrays += [w1, b1, w2]
    in_specs += [fixed_spec(D, W1C), fixed_spec(1, W1C), fixed_spec(Y, W2C)]

    kernel = _make_kernel(bool(sample), Z, Y, OUT_W)
    slab = pl.pallas_call(
        kernel,
        out_shape=jax.ShapeDtypeStruct((N_pad, OUT_W), jnp.float32),
        grid=grid,
        in_specs=in_specs,
        out_specs=pl.BlockSpec((TN, OUT_W), lambda i: (i, 0)),
        compiler_params=pltpu.CompilerParams(
            dimension_semantics=("parallel",)),
    )(*in_arrays)

    slab = slab[:N]
    z = slab[:, 0:Z]
    y = slab[:, Z:Z + Y]
    mean_qs = slab[:, Z + Y:2 * Z + Y]
    logvar_qs = slab[:, 2 * Z + Y:3 * Z + Y]
    mean2_qs = slab[:, 3 * Z + Y:3 * Z + 2 * Y]
    logvar2_qs = slab[:, 3 * Z + 2 * Y:3 * Z + 3 * Y]

    return (z.reshape(B, T, Z), y.reshape(B, T, Y),
            mean_qs.reshape(B, T, Z), logvar_qs.reshape(B, T, Z),
            mean2_qs.reshape(B, T, Y), logvar2_qs.reshape(B, T, Y))


def init_params(key, input_size, latent_z_size, latent_y_size):
    """Deterministic nn.Linear-style init: U(-1/sqrt(fan_in), 1/sqrt(fan_in))."""
    def linear(k, fan_in, fan_out):
        kw, kb = jax.random.split(k)
        bound = 1.0 / (fan_in ** 0.5)
        w = jax.random.uniform(kw, (fan_in, fan_out), jnp.float32, -bound, bound)
        b = jax.random.uniform(kb, (fan_out,), jnp.float32, -bound, bound)
        return w, b

    k1, k2, k3, k4 = jax.random.split(key, 4)
    w_mean2, b_mean2 = linear(k1, input_size, latent_y_size)
    w_logvar2, b_logvar2 = linear(k2, input_size, latent_y_size)
    w_mean, b_mean = linear(k3, input_size + latent_y_size, latent_z_size)
    w_logvar, b_logvar = linear(k4, input_size + latent_y_size, latent_z_size)
    return dict(w_mean2=w_mean2, b_mean2=b_mean2,
                w_logvar2=w_logvar2, b_logvar2=b_logvar2,
                w_mean=w_mean, b_mean=b_mean,
                w_logvar=w_logvar, b_logvar=b_logvar)


def reference_forward(inputs, mask, params, sample, eps_y=None, eps_z=None):
    """Pure-JAX reference mirroring the PyTorch gaussian_hier_layer.forward."""
    m = mask[..., None]
    mean2 = inputs @ params["w_mean2"] + params["b_mean2"]
    logvar2 = inputs @ params["w_logvar2"] + params["b_logvar2"]
    if sample:
        y = (mean2 + jnp.exp(0.5 * logvar2) * eps_y) * m
    else:
        y = mean2 * m
    gi = jnp.concatenate([inputs, y], axis=-1)
    mean = gi @ params["w_mean"] + params["b_mean"]
    logvar = gi @ params["w_logvar"] + params["b_logvar"]
    if sample:
        z = (mean + jnp.exp(0.5 * logvar) * eps_z) * m
    else:
        z = mean * m
    return z, y, mean, logvar, mean2, logvar2


if __name__ == "__main__":
    B, T, D, Z, Y = 2, 8, 32, 16, 8
    key = jax.random.PRNGKey(0)
    k_param, k_x, k_ey, k_ez = jax.random.split(key, 4)

    params = init_params(k_param, D, Z, Y)
    inputs = jax.random.normal(k_x, (B, T, D), dtype=jnp.float32)

    # sequence mask: first example full length, second masks last 3 positions
    lengths = jnp.array([T, T - 3])
    mask = (jnp.arange(T)[None, :] < lengths[:, None]).astype(jnp.float32)

    # deterministic Gaussian noise (shared with the reference check)
    eps_y = jax.random.normal(k_ey, (B * T, Y), dtype=jnp.float32)
    eps_z = jax.random.normal(k_ez, (B * T, Z), dtype=jnp.float32)

    # sampled (stochastic) path
    outs_sample = gaussian_hier_layer_forward(
        inputs, mask, params, sample=True, eps_y=eps_y, eps_z=eps_z)
    outs_sample = jax.block_until_ready(outs_sample)

    # deterministic (sample=False) path — no noise operands DMA'd at all
    outs_det = gaussian_hier_layer_forward(inputs, mask, params, sample=False)
    outs_det = jax.block_until_ready(outs_det)

    # correctness check against the pure-JAX reference (tolerance covers any
    # default-precision matmul differences between XLA and Mosaic paths)
    ref_sample = reference_forward(inputs, mask, params, True,
                                   eps_y.reshape(B, T, Y), eps_z.reshape(B, T, Z))
    ref_det = reference_forward(inputs, mask, params, False)
    for got, want in zip(outs_sample, ref_sample):
        assert jnp.allclose(got, want, atol=2e-2, rtol=2e-2)
    for got, want in zip(outs_det, ref_det):
        assert jnp.allclose(got, want, atol=2e-2, rtol=2e-2)

    print("KERNEL_OK")
</pallas_src>

<mosaic_0001>
module attributes {stable_mosaic.version = 11 : i64} {
  func.func @kernel(%arg0: i32, %arg1: memref<16x32xf32, #tpu.memory_space<vmem>>, %arg2: memref<16x1xf32, #tpu.memory_space<vmem>>, %arg3: memref<16x8xf32, #tpu.memory_space<vmem>>, %arg4: memref<16x16xf32, #tpu.memory_space<vmem>>, %arg5: memref<32x48xf32, #tpu.memory_space<vmem>>, %arg6: memref<1x48xf32, #tpu.memory_space<vmem>>, %arg7: memref<8x32xf32, #tpu.memory_space<vmem>>, %arg8: memref<16x128xf32, #tpu.memory_space<vmem>>) attributes {dimension_semantics = [#tpu.dimension_semantics<parallel>], iteration_bounds = array<i64: 1>, scalar_prefetch = 0 : i64, scratch_operands = 0 : i64, tpu.core_type = #tpu.core_type<tc>, window_params = [{transform_indices = @transform_0, window_bounds = array<i64: 16, 32>}, {transform_indices = @transform_1, window_bounds = array<i64: 16, 1>}, {transform_indices = @transform_2, window_bounds = array<i64: 16, 8>}, {transform_indices = @transform_3, window_bounds = array<i64: 16, 16>}, {pipeline_mode = #tpu.pipeline_mode<synchronous>, transform_indices = @transform_4, window_bounds = array<i64: 32, 48>}, {pipeline_mode = #tpu.pipeline_mode<synchronous>, transform_indices = @transform_5, window_bounds = array<i64: 1, 48>}, {pipeline_mode = #tpu.pipeline_mode<synchronous>, transform_indices = @transform_6, window_bounds = array<i64: 8, 32>}, {transform_indices = @transform_7, window_bounds = array<i64: 16, 128>}]} {
    %c0 = arith.constant 0 : index
    %c0_0 = arith.constant 0 : index
    %0 = vector.load %arg1[%c0, %c0_0] : memref<16x32xf32, #tpu.memory_space<vmem>>, vector<16x32xf32>
    %c0_1 = arith.constant 0 : index
    %c0_2 = arith.constant 0 : index
    %1 = vector.load %arg2[%c0_1, %c0_2] : memref<16x1xf32, #tpu.memory_space<vmem>>, vector<16x1xf32>
    %c0_3 = arith.constant 0 : index
    %c0_4 = arith.constant 0 : index
    %2 = vector.load %arg5[%c0_3, %c0_4] : memref<32x48xf32, #tpu.memory_space<vmem>>, vector<32x48xf32>
    %cst = arith.constant dense<0.000000e+00> : vector<16x48xf32>
    %3 = tpu.matmul %0, %2, %cst {dimension_numbers = #tpu.dot_dimension_numbers<[1], [0], [0], [1], [0, 0, 1, 1], [], []>} : vector<16x32xf32>, vector<32x48xf32>, vector<16x48xf32> -> vector<16x48xf32>
    %c0_5 = arith.constant 0 : index
    %c0_6 = arith.constant 0 : index
    %4 = vector.load %arg6[%c0_5, %c0_6] : memref<1x48xf32, #tpu.memory_space<vmem>>, vector<1x48xf32>
    %5 = vector.broadcast %4 : vector<1x48xf32> to vector<16x48xf32>
    %6 = arith.addf %3, %5 : vector<16x48xf32>
    %7 = vector.extract_strided_slice %6 {offsets = [0, 0], sizes = [16, 8], strides = [1, 1]} : vector<16x48xf32> to vector<16x8xf32>
    %8 = vector.extract_strided_slice %6 {offsets = [0, 8], sizes = [16, 8], strides = [1, 1]} : vector<16x48xf32> to vector<16x8xf32>
    %9 = vector.extract_strided_slice %6 {offsets = [0, 16], sizes = [16, 16], strides = [1, 1]} : vector<16x48xf32> to vector<16x16xf32>
    %10 = vector.extract_strided_slice %6 {offsets = [0, 32], sizes = [16, 16], strides = [1, 1]} : vector<16x48xf32> to vector<16x16xf32>
    %cst_7 = arith.constant 5.000000e-01 : f32
    %11 = vector.broadcast %cst_7 : f32 to vector<16x8xf32>
    %12 = arith.mulf %11, %8 : vector<16x8xf32>
    %13 = math.exp %12 : vector<16x8xf32>
    %c0_8 = arith.constant 0 : index
    %c0_9 = arith.constant 0 : index
    %14 = vector.load %arg3[%c0_8, %c0_9] : memref<16x8xf32, #tpu.memory_space<vmem>>, vector<16x8xf32>
    %15 = arith.mulf %13, %14 : vector<16x8xf32>
    %16 = arith.addf %7, %15 : vector<16x8xf32>
    %17 = vector.broadcast %1 : vector<16x1xf32> to vector<16x8xf32>
    %18 = arith.mulf %16, %17 : vector<16x8xf32>
    %c0_10 = arith.constant 0 : index
    %c0_11 = arith.constant 0 : index
    %19 = vector.load %arg7[%c0_10, %c0_11] : memref<8x32xf32, #tpu.memory_space<vmem>>, vector<8x32xf32>
    %cst_12 = arith.constant dense<0.000000e+00> : vector<16x32xf32>
    %20 = tpu.matmul %18, %19, %cst_12 {dimension_numbers = #tpu.dot_dimension_numbers<[1], [0], [0], [1], [0, 0, 1, 1], [], []>} : vector<16x8xf32>, vector<8x32xf32>, vector<16x32xf32> -> vector<16x32xf32>
    %21 = vector.extract_strided_slice %20 {offsets = [0, 0], sizes = [16, 16], strides = [1, 1]} : vector<16x32xf32> to vector<16x16xf32>
    %22 = arith.addf %9, %21 : vector<16x16xf32>
    %23 = vector.extract_strided_slice %20 {offsets = [0, 16], sizes = [16, 16], strides = [1, 1]} : vector<16x32xf32> to vector<16x16xf32>
    %24 = arith.addf %10, %23 : vector<16x16xf32>
    %cst_13 = arith.constant 5.000000e-01 : f32
    %25 = vector.broadcast %cst_13 : f32 to vector<16x16xf32>
    %26 = arith.mulf %25, %24 : vector<16x16xf32>
    %27 = math.exp %26 : vector<16x16xf32>
    %c0_14 = arith.constant 0 : index
    %c0_15 = arith.constant 0 : index
    %28 = vector.load %arg4[%c0_14, %c0_15] : memref<16x16xf32, #tpu.memory_space<vmem>>, vector<16x16xf32>
    %29 = arith.mulf %27, %28 : vector<16x16xf32>
    %30 = arith.addf %22, %29 : vector<16x16xf32>
    %31 = vector.broadcast %1 : vector<16x1xf32> to vector<16x16xf32>
    %32 = arith.mulf %30, %31 : vector<16x16xf32>
    %cst_16 = arith.constant 0.000000e+00 : f32
    %33 = vector.broadcast %cst_16 : f32 to vector<16x56xf32>
    %34 = tpu.concatenate %32, %18, %22, %24, %7, %8, %33 in 1 : vector<16x16xf32>, vector<16x8xf32>, vector<16x16xf32>, vector<16x16xf32>, vector<16x8xf32>, vector<16x8xf32>, vector<16x56xf32> -> vector<16x128xf32>
    %c0_17 = arith.constant 0 : index
    %c0_18 = arith.constant 0 : index
    %35 = vector.load %arg8[%c0_17, %c0_18] : memref<16x128xf32, #tpu.memory_space<vmem>>, vector<16x128xf32>
    tpu.vector_store %arg8[%c0_17, %c0_18], %34 {strides = array<i32>} : memref<16x128xf32, #tpu.memory_space<vmem>>, vector<16x128xf32>,
    return
  }
  func.func @transform_0(%arg0: i32) -> (i32, i32) {
    %c0_i32 = arith.constant 0 : i32
    %c0_i32_0 = arith.constant 0 : i32
    return %arg0, %c0_i32 : i32, i32
  }
  func.func @transform_1(%arg0: i32) -> (i32, i32) {
    %c0_i32 = arith.constant 0 : i32
    %c0_i32_0 = arith.constant 0 : i32
    return %arg0, %c0_i32 : i32, i32
  }
  func.func @transform_2(%arg0: i32) -> (i32, i32) {
    %c0_i32 = arith.constant 0 : i32
    %c0_i32_0 = arith.constant 0 : i32
    return %arg0, %c0_i32 : i32, i32
  }
  func.func @transform_3(%arg0: i32) -> (i32, i32) {
    %c0_i32 = arith.constant 0 : i32
    %c0_i32_0 = arith.constant 0 : i32
    return %arg0, %c0_i32 : i32, i32
  }
  func.func @transform_4(%arg0: i32) -> (i32, i32) {
    %c0_i32 = arith.constant 0 : i32
    %c0_i32_0 = arith.constant 0 : i32
    %c0_i32_1 = arith.constant 0 : i32
    return %c0_i32, %c0_i32_0 : i32, i32
  }
  func.func @transform_5(%arg0: i32) -> (i32, i32) {
    %c0_i32 = arith.constant 0 : i32
    %c0_i32_0 = arith.constant 0 : i32
    %c0_i32_1 = arith.constant 0 : i32
    return %c0_i32, %c0_i32_0 : i32, i32
  }
  func.func @transform_6(%arg0: i32) -> (i32, i32) {
    %c0_i32 = arith.constant 0 : i32
    %c0_i32_0 = arith.constant 0 : i32
    %c0_i32_1 = arith.constant 0 : i32
    return %c0_i32, %c0_i32_0 : i32, i32
  }
  func.func @transform_7(%arg0: i32) -> (i32, i32) {
    %c0_i32 = arith.constant 0 : i32
    %c0_i32_0 = arith.constant 0 : i32
    return %arg0, %c0_i32 : i32, i32
  }
}

</mosaic_0001>

<llo_original>
// kernel: tpu_custom_call.1
$region0: #{tpu_custom_call.1}
  #allocation0 [shape = 'u32[]', space=smem, size = 0x4, offset = 0x4, fixed_abs, tag = 'smem constant byte address 0x4 - core index']
  #allocation1 [shape = 'u32[144,128]{1,0:T(1,128)}', space=vmem, size = 0x12000, scoped, tag = 'internal scratch']
  %s0 = inlined_call_operand.vmem [shape: f32[16,32], index: 0, kind: input, shape index: {}]
  %s1 = inlined_call_operand.vmem [shape: f32[16,1], index: 1, kind: input, shape index: {}]
  %s2 = inlined_call_operand.vmem [shape: f32[16,8], index: 2, kind: input, shape index: {}]
  %s3 = inlined_call_operand.hbm [shape: f32[16,16], index: 3, kind: input, shape index: {}]
  %s4 = inlined_call_operand.vmem [shape: f32[32,48], index: 4, kind: input, shape index: {}]
  %s5 = inlined_call_operand.vmem [shape: f32[1,48], index: 5, kind: input, shape index: {}]
  %s6 = inlined_call_operand.vmem [shape: f32[8,32], index: 6, kind: input, shape index: {}]
  %s7 = inlined_call_operand.hbm [shape: f32[16,128], index: 7, kind: output, shape index: {}]
  %s8 = sld [smem:[#allocation0]]
  $region42: #{tpu_custom_call.1} parent=0
    _
  %s10 = ssub.s32 1, %s8
  %s11 = scalar_select 0, %s10, %s8
  $region1: #{tpu_custom_call.1} parent=0
    #allocation2 [shape = 'u8[8192]{0}', space=vmem, size = 0x2000, scoped, tag = 'input window, operand 3, single buffered']
    #allocation3 [shape = 's32[1]{0}', space=sflag, size = 0x4, scoped, tag = 'scoped memory for tpu_custom_call.1']
    #allocation4 [shape = 's32[1]{0}', space=sflag, size = 0x4, scoped, tag = 'scoped memory for tpu_custom_call.1']
    #allocation5 [shape = 'u8[8192]{0}', space=vmem, size = 0x2000, scoped, tag = 'output window, operand 0, single buffered']
    %12 = vsyncpa [#allocation3], 0
    %13 = vsyncpa [#allocation4], 0
    // Predicated region
    $region2: #{tpu_custom_call.1} parent=1 // pred_check
      _
    $region3: #{tpu_custom_call.1} parent=1 // pred_check_branch
      %15 = sbr.rel (0) target = $region5
    $region4: #{tpu_custom_call.1} parent=1 // pred_region
      _
    $region5: #{tpu_custom_call.1} parent=1 // pred_fallthru
      _
    // Predicated region
    $region6: #{tpu_custom_call.1} parent=1 // pred_check
      _
    $region7: #{tpu_custom_call.1} parent=1 // pred_check_branch
      %17 = sbr.rel (0) target = $region9
    $region8: #{tpu_custom_call.1} parent=1 // pred_region
      _
    $region9: #{tpu_custom_call.1} parent=1 // pred_fallthru
      _
    // Predicated region
    $region10: #{tpu_custom_call.1} parent=1 // pred_check
      _
    $region11: #{tpu_custom_call.1} parent=1 // pred_check_branch
      %19 = sbr.rel (0) target = $region13
    $region12: #{tpu_custom_call.1} parent=1 // pred_region
      _
    $region13: #{tpu_custom_call.1} parent=1 // pred_fallthru
      _
    // Predicated region
    $region14: #{tpu_custom_call.1} parent=1 // pred_check
      _
    $region15: #{tpu_custom_call.1} parent=1 // pred_check_branch
      %21 = sbr.rel (0) target = $region17
    $region16: #{tpu_custom_call.1} parent=1 // pred_region
      %s23 = ssub.s32 256, 256
      %24 = vsyncadd [#allocation3], %s23
      %s25 = sshll.u32 [#allocation2], 4
      %s26 = int_to_ptr.vmem [resolvable:$true] %s25
      %31 = dma.hbm_to_vmem [thread:$0]  %s3, 256, %s26, [#allocation3], 128, 128, 8
    $region17: #{tpu_custom_call.1} parent=1 // pred_fallthru
      _
    // Predicated region
    $region18: #{tpu_custom_call.1} parent=1 // pred_check
      _
    $region19: #{tpu_custom_call.1} parent=1 // pred_check_branch
      %33 = sbr.rel (0) target = $region21
    $region20: #{tpu_custom_call.1} parent=1 // pred_region
      _
    $region21: #{tpu_custom_call.1} parent=1 // pred_fallthru
      _
    // Predicated region
    $region22: #{tpu_custom_call.1} parent=1 // pred_check
      _
    $region23: #{tpu_custom_call.1} parent=1 // pred_check_branch
      %35 = sbr.rel (0) target = $region25
    $region24: #{tpu_custom_call.1} parent=1 // pred_region
      _
    $region25: #{tpu_custom_call.1} parent=1 // pred_fallthru
      _
    // Predicated region
    $region26: #{tpu_custom_call.1} parent=1 // pred_check
      _
    $region27: #{tpu_custom_call.1} parent=1 // pred_check_branch
      %37 = sbr.rel (0) target = $region29
    $region28: #{tpu_custom_call.1} parent=1 // pred_region
      _
    $region29: #{tpu_custom_call.1} parent=1 // pred_fallthru
      _
    // Predicated region
    $region30: #{tpu_custom_call.1} parent=1 // pred_check
      _
    $region31: #{tpu_custom_call.1} parent=1 // pred_check_branch
      %39 = sbr.rel (0) target = $region33
    $region32: #{tpu_custom_call.1} parent=1 // pred_region
      %40 = dma.done [#allocation3], 256
    $region33: #{tpu_custom_call.1} parent=1 // pred_fallthru
      _
    %v41 = vld [vmem:[%s0] sm:$0xff]
    %v42 = vld [vmem:[%s0 + $0x8] sm:$0xff]
    %v43 = vld [vmem:[%s1] sm:$0xff]
    %v44 = vld [vmem:[%s1 + $0x8] sm:$0xff]
    %v45 = vld [vmem:[%s4] sm:$0xff]
    %v46 = vld [vmem:[%s4 + $0x8] sm:$0xff]
    %v47 = vld [vmem:[%s4 + $0x10] sm:$0xff]
    %v48 = vld [vmem:[%s4 + $0x18] sm:$0xff]
    %v49 = vld [vmem:[%s5] sm:$0x1]
    %v51 = vlaneseq
    %v52 = vshrl.u32 %v51, 7
    %v53 = vsub.s32 0, %v52
    %v54 = vrot.slane %v49, %v53
    %vm56 = vcmask 261120
    %v58 = vsel %vm56, %v41, 0
    %v61 = vsel %vm56, %v42, 0
    %63 = vmatprep.subr.mxu0 0.0
    %64 = vmatpush1.msra.mxu0 %v45
    %65 = vmatprep.subr.mxu0 0.0
    %66 = vmatpush1.msra.mxu0 %v46
    %67 = vmatprep.subr.mxu0 0.0
    %68 = vmatpush1.msra.mxu0 %v47
    %69 = vmatprep.subr.mxu0 0.0
    %70 = vmatpush1.msra.mxu0 %v48
    %71 = vmatprep.subr.mxu0 0.0
    %72 = vmatpush1.msra.mxu0 0.0
    %73 = vmatprep.subr.mxu0 0.0
    %74 = vmatpush1.msra.mxu0 0.0
    %75 = vmatprep.subr.mxu0 0.0
    %76 = vmatpush1.msra.mxu0 0.0
    %77 = vmatprep.subr.mxu0 0.0
    %78 = vmatpush1.msra.mxu0 0.0
    %79 = vmatprep.subr.mxu0 0.0
    %80 = vmatpush1.msra.mxu0 0.0
    %81 = vmatprep.subr.mxu0 0.0
    %82 = vmatpush1.msra.mxu0 0.0
    %83 = vmatprep.subr.mxu0 0.0
    %84 = vmatpush1.msra.mxu0 0.0
    %85 = vmatprep.subr.mxu0 0.0
    %86 = vmatpush1.msra.mxu0 0.0
    %87 = vmatprep.subr.mxu0 0.0
    %88 = vmatpush1.msra.mxu0 0.0
    %89 = vmatprep.subr.mxu0 0.0
    %90 = vmatpush1.msra.mxu0 0.0
    %91 = vmatprep.subr.mxu0 0.0
    %92 = vmatpush1.msra.mxu0 0.0
    %93 = vmatprep.subr.mxu0 0.0
    %94 = vmatpush1.msra.mxu0 0.0
    %95 = vmatprep.subr.mxu0 0.0
    %96 = vmatpush1.msra.mxu0 0.0
    %97 = vmatprep.subr.mxu0 0.0
    %98 = vmatpush1.msra.mxu0 0.0
    %99 = vmatprep.subr.mxu0 0.0
    %100 = vmatpush1.msra.mxu0 0.0
    %101 = vmatprep.subr.mxu0 0.0
    %102 = vmatpush1.msra.mxu0 0.0
    %103 = vmatprep.subr.mxu0 0.0
    %104 = vmatpush1.msra.mxu0 0.0
    %105 = vmatprep.subr.mxu0 0.0
    %106 = vmatpush1.msra.mxu0 0.0
    %107 = vmatprep.subr.mxu0 0.0
    %108 = vmatpush1.msra.mxu0 0.0
    %109 = vmatprep.subr.mxu0 0.0
    %110 = vmatpush1.msra.mxu0 0.0
    %111 = vmatprep.subr.mxu0 0.0
    %112 = vmatpush1.msra.mxu0 0.0
    %113 = vmatprep.subr.mxu0 0.0
    %114 = vmatpush1.msra.mxu0 0.0
    %115 = vmatprep.subr.mxu0 0.0
    %116 = vmatpush1.msra.mxu0 0.0
    %117 = vmatprep.subr.mxu0 0.0
    %118 = vmatpush1.msra.mxu0 0.0
    %119 = vmatprep.subr.mxu0 0.0
    %120 = vmatpush1.msra.mxu0 0.0
    %121 = vmatprep.subr.mxu0 0.0
    %122 = vmatpush1.msra.mxu0 0.0
    %123 = vmatprep.subr.mxu0 0.0
    %124 = vmatpush1.msra.mxu0 0.0
    %125 = vmatprep.subr.mxu0 0.0
    %126 = vmatpush1.msra.mxu0 0.0
    %127 = vmatprep.mubr.f32.mxu0 0.0
    %128 = vmatmul.mubr.f32.gmra.mrb[0].mxu0 %v58
    %v129 = vpop.f32.mrb[0].mxu0
    %v130 = vadd.f32 %v54, %v129
    %v131 = vpop.f32.mrb[0].mxu0
    %132 = vmatprep.mubr.f32.mxu0 0.0
    %133 = vmatmul.mubr.f32.gmra.mrb[0].mxu0 %v61
    %v134 = vpop.f32.mrb[0].mxu0
    %v135 = vadd.f32 %v54, %v134
    %v136 = vpop.f32.mrb[0].mxu0
    %137 = vdwg.mxu0
    %v138 = vmul.f32 %v130, 0.5
    %v139 = vmul.f32 %v135, 0.5
    %v140 = vmul.f32 %v138, 1.442695
    %v141 = vpow.pop %v140
    %v142 = vmul.f32 %v139, 1.442695
    %v143 = vpow.pop %v142
    %v144 = vld [vmem:[%s2] sm:$0xff]
    %v145 = vld [vmem:[%s2 + $0x8] sm:$0xff]
    %148 = vrot.lane.b32.xlu0 %v144, 8
    %v149 = vpop.permute.xlu0 %148
    %150 = vrot.lane.b32.xlu0 %v145, 8
    %v151 = vpop.permute.xlu0 %150
    %v154 = vmul.f32 %v141, %v149
    %v155 = vmul.f32 %v143, %v151
    %158 = vrot.lane.b32.xlu0 %v154, 120
    %v159 = vpop.permute.xlu0 %158
    %160 = vrot.lane.b32.xlu0 %v155, 120
    %v161 = vpop.permute.xlu0 %160
    %v164 = vadd.f32 %v130, %v159
    %v165 = vadd.f32 %v135, %v161
    %167 = vset.pattern.permute.xlu0 0
    %168 = vperm.xlu0 %167, %v43
    %v169 = vpop.permute.xlu0 %168
    %172 = vset.pattern.permute.xlu0 0
    %173 = vperm.xlu0 %172, %v44
    %v174 = vpop.permute.xlu0 %173
    %v176 = vmul.f32 %v164, %v169
    %v177 = vmul.f32 %v165, %v174
    %v178 = vld [vmem:[%s6] sm:$0xff]
    %vm179 = vcmask 64512
    %v181 = vsel %vm179, %v176, 0
    %v184 = vsel %vm179, %v177, 0
    %186 = vmatprep.subr.mxu0 0.0
    %187 = vmatpush1.msra.mxu0 %v178
    %188 = vmatprep.subr.mxu0 0.0
    %189 = vmatpush1.msra.mxu0 0.0
    %190 = vmatprep.subr.mxu0 0.0
    %191 = vmatpush1.msra.mxu0 0.0
    %192 = vmatprep.subr.mxu0 0.0
    %193 = vmatpush1.msra.mxu0 0.0
    %194 = vmatprep.subr.mxu0 0.0
    %195 = vmatpush1.msra.mxu0 0.0
    %196 = vmatprep.subr.mxu0 0.0
    %197 = vmatpush1.msra.mxu0 0.0
    %198 = vmatprep.subr.mxu0 0.0
    %199 = vmatpush1.msra.mxu0 0.0
    %200 = vmatprep.subr.mxu0 0.0
    %201 = vmatpush1.msra.mxu0 0.0
    %202 = vmatprep.subr.mxu0 0.0
    %203 = vmatpush1.msra.mxu0 0.0
    %204 = vmatprep.subr.mxu0 0.0
    %205 = vmatpush1.msra.mxu0 0.0
    %206 = vmatprep.subr.mxu0 0.0
    %207 = vmatpush1.msra.mxu0 0.0
    %208 = vmatprep.subr.mxu0 0.0
    %209 = vmatpush1.msra.mxu0 0.0
    %210 = vmatprep.subr.mxu0 0.0
    %211 = vmatpush1.msra.mxu0 0.0
    %212 = vmatprep.subr.mxu0 0.0
    %213 = vmatpush1.msra.mxu0 0.0
    %214 = vmatprep.subr.mxu0 0.0
    %215 = vmatpush1.msra.mxu0 0.0
    %216 = vmatprep.subr.mxu0 0.0
    %217 = vmatpush1.msra.mxu0 0.0
    %218 = vmatprep.subr.mxu0 0.0
    %219 = vmatpush1.msra.mxu0 0.0
    %220 = vmatprep.subr.mxu0 0.0
    %221 = vmatpush1.msra.mxu0 0.0
    %222 = vmatprep.subr.mxu0 0.0
    %223 = vmatpush1.msra.mxu0 0.0
    %224 = vmatprep.subr.mxu0 0.0
    %225 = vmatpush1.msra.mxu0 0.0
    %226 = vmatprep.subr.mxu0 0.0
    %227 = vmatpush1.msra.mxu0 0.0
    %228 = vmatprep.subr.mxu0 0.0
    %229 = vmatpush1.msra.mxu0 0.0
    %230 = vmatprep.subr.mxu0 0.0
    %231 = vmatpush1.msra.mxu0 0.0
    %232 = vmatprep.subr.mxu0 0.0
    %233 = vmatpush1.msra.mxu0 0.0
    %234 = vmatprep.subr.mxu0 0.0
    %235 = vmatpush1.msra.mxu0 0.0
    %236 = vmatprep.subr.mxu0 0.0
    %237 = vmatpush1.msra.mxu0 0.0
    %238 = vmatprep.subr.mxu0 0.0
    %239 = vmatpush1.msra.mxu0 0.0
    %240 = vmatprep.subr.mxu0 0.0
    %241 = vmatpush1.msra.mxu0 0.0
    %242 = vmatprep.subr.mxu0 0.0
    %243 = vmatpush1.msra.mxu0 0.0
    %244 = vmatprep.subr.mxu0 0.0
    %245 = vmatpush1.msra.mxu0 0.0
    %246 = vmatprep.subr.mxu0 0.0
    %247 = vmatpush1.msra.mxu0 0.0
    %248 = vmatprep.subr.mxu0 0.0
    %249 = vmatpush1.msra.mxu0 0.0
    %250 = vmatprep.mubr.f32.mxu0 0.0
    %251 = vmatmul.mubr.f32.gmra.mrb[0].mxu0 %v181
    %v252 = vpop.f32.mrb[0].mxu0
    %v253 = vadd.f32 0.0, %v252
    %v254 = vpop.f32.mrb[0].mxu0
    %255 = vmatprep.mubr.f32.mxu0 0.0
    %256 = vmatmul.mubr.f32.gmra.mrb[0].mxu0 %v184
    %v257 = vpop.f32.mrb[0].mxu0
    %v258 = vadd.f32 0.0, %v257
    %v259 = vpop.f32.mrb[0].mxu0
    %260 = vdwg.mxu0
    %263 = vrot.lane.b32.xlu0 %v253, 16
    %v264 = vpop.permute.xlu0 %263
    %265 = vrot.lane.b32.xlu0 %v258, 16
    %v266 = vpop.permute.xlu0 %265
    %v269 = vadd.f32 %v130, %v264
    %v270 = vadd.f32 %v135, %v266
    %v271 = vmul.f32 %v269, 0.5
    %v272 = vmul.f32 %v270, 0.5
    %v273 = vmul.f32 %v271, 1.442695
    %v274 = vpow.pop %v273
    %v275 = vmul.f32 %v272, 1.442695
    %v276 = vpow.pop %v275
    %v277 = vld [vmem:[#allocation2] sm:$0xff]
    %v278 = vld [vmem:[#allocation2 + $0x8] sm:$0xff]
    %281 = vrot.lane.b32.xlu0 %v277, 32
    %v282 = vpop.permute.xlu0 %281
    %283 = vrot.lane.b32.xlu0 %v278, 32
    %v284 = vpop.permute.xlu0 %283
    %v287 = vmul.f32 %v274, %v282
    %v288 = vmul.f32 %v276, %v284
    %291 = vrot.lane.b32.xlu0 %v287, 112
    %v292 = vpop.permute.xlu0 %291
    %293 = vrot.lane.b32.xlu0 %v288, 112
    %v294 = vpop.permute.xlu0 %293
    %v297 = vadd.f32 %v269, %v292
    %v298 = vadd.f32 %v270, %v294
    %v299 = vmul.f32 %v297, %v169
    %v300 = vmul.f32 %v298, %v174
    %303 = vrot.lane.b32.xlu0 %v299, 112
    %v304 = vpop.permute.xlu0 %303
    %305 = vrot.lane.b32.xlu0 %v300, 112
    %v306 = vpop.permute.xlu0 %305
    %309 = vrot.lane.b32.xlu0 %v176, 16
    %v310 = vpop.permute.xlu0 %309
    %311 = vrot.lane.b32.xlu0 %v177, 16
    %v312 = vpop.permute.xlu0 %311
    %317 = vrot.lane.b32.xlu0 %v269, 8
    %v318 = vpop.permute.xlu0 %317
    %319 = vrot.lane.b32.xlu0 %v270, 8
    %v320 = vpop.permute.xlu0 %319
    %325 = vrot.lane.b32.xlu0 %v130, 56
    %v326 = vpop.permute.xlu0 %325
    %327 = vrot.lane.b32.xlu0 %v135, 56
    %v328 = vpop.permute.xlu0 %327
    %vm331 = vcmask 130048
    %v332 = vsel %vm331, %v304, %v310
    %v333 = vsel %vm331, %v306, %v312
    %vm334 = vcmask 195584
    %v335 = vsel %vm334, %v332, %v318
    %v336 = vsel %vm334, %v333, %v320
    %vm337 = vcmask 326656
    %v338 = vsel %vm337, %v335, %v318
    %v339 = vsel %vm337, %v336, %v320
    %vm340 = vcmask 457728
    %v341 = vsel %vm340, %v338, %v326
    %v342 = vsel %vm340, %v339, %v328
    %vm343 = vcmask 523264
    %v344 = vsel %vm343, %v341, %v326
    %v345 = vsel %vm343, %v342, %v328
    %vm346 = vcmask 588800
    %v347 = vsel %vm346, %v344, 0.0
    %v348 = vsel %vm346, %v345, 0.0
    %349 = vst [vmem:[#allocation5] sm:$0xff] %v347
    %350 = vst [vmem:[#allocation5 + $0x8] sm:$0xff] %v348
    // Predicated region
    $region34: #{tpu_custom_call.1} parent=1 // pred_check
      _
    $region35: #{tpu_custom_call.1} parent=1 // pred_check_branch
      %352 = sbr.rel (0) target = $region37
    $region36: #{tpu_custom_call.1} parent=1 // pred_region
      %s354 = ssub.s32 256, 256
      %355 = vsyncadd [#allocation4], %s354
      %s356 = sshll.u32 [#allocation5], 4
      %s357 = int_to_ptr.vmem [resolvable:$true] %s356
      %362 = dma.vmem_to_hbm [thread:$0]  %s357, 256, %s7, [#allocation4], 128, 128, 8
    $region37: #{tpu_custom_call.1} parent=1 // pred_fallthru
      _
    // Predicated region
    $region38: #{tpu_custom_call.1} parent=1 // pred_check
      _
    $region39: #{tpu_custom_call.1} parent=1 // pred_check_branch
      %364 = sbr.rel (0) target = $region41
    $region40: #{tpu_custom_call.1} parent=1 // pred_region
      %365 = dma.done [#allocation4], 256
    $region41: #{tpu_custom_call.1} parent=1 // pred_fallthru
      _
    %366 = vsyncpa [#allocation3], 1
    %367 = vsyncpa [#allocation4], 1

</llo_original>
